<compile_context>
chip_gen: v6e
topology: v6e:2x2x1
jax: 0.10.0
libtpu: 0.0.40
codegen_flags: <defaults>
</compile_context>

<pallas_src>
import functools
import math

import jax
import jax.numpy as jnp
from jax.experimental import pallas as pl
from jax.experimental.pallas import tpu as pltpu


def _round_up(v, m):
    return ((v + m - 1) // m) * m


def _adapter_kernel(x_ref, w1_ref, b1_ref, w2_ref, b2_ref, o_ref, acc_ref,
                    *, dh_chunk, n_chunks, compute_dtype):
    """Fused Linear -> GELU -> Linear for one (tm, Din_p) batch tile.

    The hidden dimension is processed in chunks of `dh_chunk` so the GELU
    intermediate stays small (a few vregs); the second matmul becomes a
    K-accumulation into an f32 VMEM scratch.
    """
    x = x_ref[...].astype(compute_dtype)            # (tm, Din_p) -> bf16 on MXU
    inv_sqrt2 = jnp.float32(1.0 / math.sqrt(2.0))

    # n_chunks is a small static int (<= Dh_p / 128): statically unrolled,
    # all ref slices below are static (zero-cost views).
    for c in range(n_chunks):
        lo = c * dh_chunk
        w1c = w1_ref[:, lo:lo + dh_chunk]           # (Din_p, dh_chunk)
        b1c = b1_ref[:, lo:lo + dh_chunk]           # (1, dh_chunk) f32
        # ---- linear1 chunk (f32 accumulation on the MXU) ----
        y = jnp.dot(x, w1c, preferred_element_type=jnp.float32) + b1c
        # ---- exact erf GELU (matches torch.nn.GELU() default) ----
        y = 0.5 * y * (1.0 + jax.lax.erf(y * inv_sqrt2))
        # ---- linear2 chunk: accumulate over the hidden dim ----
        w2c = w2_ref[lo:lo + dh_chunk, :]           # (dh_chunk, Dout_p)
        partial = jnp.dot(y.astype(compute_dtype), w2c,
                          preferred_element_type=jnp.float32)
        if c == 0:
            acc_ref[...] = partial
        else:
            acc_ref[...] += partial

    o_ref[...] = (acc_ref[...] + b2_ref[...]).astype(o_ref.dtype)


def prepare_adapter_params(w1, b1, w2, b2, compute_dtype=jnp.bfloat16):
    """Pad weights/biases to 128-multiples and cast MXU operands ONCE.

    Hoisted out of the per-call path so adapter_forward() never re-pads or
    re-casts the constant weights.  Weights are (in_features, out_features).
    Zero padding keeps the math exact: padded Din columns of x / rows of w1
    contribute 0; padded hidden columns get b1=0 -> GELU(0)=0 and the matching
    w2 rows are 0; padded output columns are sliced off outside the kernel.
    """
    Din, Dh = w1.shape
    Dh2, Dout = w2.shape
    assert Dh2 == Dh and b1.shape == (Dh,) and b2.shape == (Dout,)
    Din_p, Dh_p, Dout_p = (_round_up(d, 128) for d in (Din, Dh, Dout))

    w1p = jnp.pad(w1, ((0, Din_p - Din), (0, Dh_p - Dh))).astype(compute_dtype)
    b1p = jnp.pad(b1, (0, Dh_p - Dh)).astype(jnp.float32).reshape(1, Dh_p)
    w2p = jnp.pad(w2, ((0, Dh_p - Dh), (0, Dout_p - Dout))).astype(compute_dtype)
    b2p = jnp.pad(b2, (0, Dout_p - Dout)).astype(jnp.float32).reshape(1, Dout_p)
    return {
        "w1": w1p, "b1": b1p, "w2": w2p, "b2": b2p,
        "dims": (Din, Dh, Dout), "compute_dtype": compute_dtype,
    }


def adapter_forward(x, params, *, tm=128, dh_chunk=512):
    """x: (M, Din) -> (M, Dout).  `params` from prepare_adapter_params()."""
    Din, Dh, Dout = params["dims"]
    w1p, b1p, w2p, b2p = params["w1"], params["b1"], params["w2"], params["b2"]
    compute_dtype = params["compute_dtype"]
    Din_p, Dh_p = w1p.shape
    Dout_p = w2p.shape[1]

    M = x.shape[0]
    assert x.shape[1] == Din

    # Batch tile: multiple of 16 (bf16 sublane packing), no larger than the
    # rounded-up batch so tiny inputs don't pad to a full 128-row tile.
    tm = max(16, _round_up(tm, 16))
    tm = min(tm, _round_up(M, 16))
    Mp = _round_up(M, tm)

    # Only pad x when it is actually misaligned (the common aligned case,
    # e.g. feature_dim=1024, skips the extra HBM pass entirely).
    if (Mp, Din_p) != (M, Din):
        xp = jnp.pad(x, ((0, Mp - M), (0, Din_p - Din)))
    else:
        xp = x

    # Hidden-dim chunk: largest multiple of 128 <= dh_chunk that divides Dh_p.
    dh_chunk = min(max(128, (dh_chunk // 128) * 128), Dh_p)
    while Dh_p % dh_chunk:
        dh_chunk -= 128
    n_chunks = Dh_p // dh_chunk

    grid = (Mp // tm,)

    # VMEM budget derived from actual buffer sizes (v7x: 64 MiB per core).
    wt_bytes = jnp.dtype(compute_dtype).itemsize
    x_bytes = xp.dtype.itemsize
    vmem_bytes = (
        2 * tm * Din_p * x_bytes           # x tile, double-buffered
        + 2 * Din_p * Dh_p * wt_bytes      # w1 (constant index -> DMA'd once)
        + 2 * Dh_p * Dout_p * wt_bytes     # w2
        + 2 * 8 * (Dh_p + Dout_p) * 4      # biases (sublane-padded)
        + 2 * tm * Dout_p * x_bytes        # out tile, double-buffered
        + tm * Dout_p * 4                  # f32 accumulator scratch
    )
    vmem_limit = min(max(int(vmem_bytes * 1.25) + (2 << 20), 16 << 20), 64 << 20)

    flops = 2 * Mp * Din_p * Dh_p + 2 * Mp * Dh_p * Dout_p
    bytes_accessed = (
        Mp * Din_p * x_bytes + Mp * Dout_p * x_bytes
        + (Din_p * Dh_p + Dh_p * Dout_p) * wt_bytes
        + (Dh_p + Dout_p) * 4
    )
    cost = pl.CostEstimate(flops=flops, transcendentals=Mp * Dh_p,
                           bytes_accessed=bytes_accessed)

    kernel = functools.partial(
        _adapter_kernel, dh_chunk=dh_chunk, n_chunks=n_chunks,
        compute_dtype=compute_dtype)

    out_p = pl.pallas_call(
        kernel,
        out_shape=jax.ShapeDtypeStruct((Mp, Dout_p), x.dtype),
        grid_spec=pltpu.PrefetchScalarGridSpec(
            num_scalar_prefetch=0,
            grid=grid,
            in_specs=[
                pl.BlockSpec((tm, Din_p), lambda i: (i, 0)),     # x tile (streamed)
                pl.BlockSpec((Din_p, Dh_p), lambda i: (0, 0)),   # w1 (resident)
                pl.BlockSpec((1, Dh_p), lambda i: (0, 0)),       # b1
                pl.BlockSpec((Dh_p, Dout_p), lambda i: (0, 0)),  # w2 (resident)
                pl.BlockSpec((1, Dout_p), lambda i: (0, 0)),     # b2
            ],
            out_specs=pl.BlockSpec((tm, Dout_p), lambda i: (i, 0)),
            scratch_shapes=[pltpu.VMEM((tm, Dout_p), jnp.float32)],
        ),
        compiler_params=pltpu.CompilerParams(
            dimension_semantics=("parallel",),
            vmem_limit_bytes=vmem_limit,
        ),
        cost_estimate=cost,
    )(xp, w1p, b1p, w2p, b2p)

    if (Mp, Dout_p) != (M, Dout):
        return out_p[:M, :Dout]
    return out_p


def init_adapter_params(key, in_features, out_features, dtype=jnp.float32):
    """Deterministic init mimicking torch.nn.Linear default U(-1/sqrt(fan_in), ...)."""
    k1, k2, k3, k4 = jax.random.split(key, 4)
    bound1 = 1.0 / math.sqrt(in_features)
    bound2 = 1.0 / math.sqrt(out_features)
    # weights stored as (in, out) == transpose of the torch (out, in) layout
    w1 = jax.random.uniform(k1, (in_features, out_features), dtype, -bound1, bound1)
    b1 = jax.random.uniform(k2, (out_features,), dtype, -bound1, bound1)
    w2 = jax.random.uniform(k3, (out_features, out_features), dtype, -bound2, bound2)
    b2 = jax.random.uniform(k4, (out_features,), dtype, -bound2, bound2)
    return w1, b1, w2, b2


def _reference(x, w1, b1, w2, b2):
    return jax.nn.gelu(x @ w1 + b1, approximate=False) @ w2 + b2


if __name__ == "__main__":
    key = jax.random.PRNGKey(0)

    # Case 1: aligned small shapes (scaled-down feature_dim=1024 / out=1024).
    batch, feature_dim, out_dim = 64, 128, 128
    kx, kp, kx2, kp2 = jax.random.split(key, 4)
    x = jax.random.normal(kx, (batch, feature_dim), jnp.float32)
    w1, b1, w2, b2 = init_adapter_params(kp, feature_dim, out_dim)
    ref = _reference(x, w1, b1, w2, b2)

    # 1a) f32 MXU operands: bit-accurate parity with the fp32 torch module.
    params_f32 = prepare_adapter_params(w1, b1, w2, b2, compute_dtype=jnp.float32)
    out_f32 = jax.block_until_ready(adapter_forward(x, params_f32))
    assert out_f32.shape == (batch, out_dim)
    assert jnp.allclose(out_f32, ref, atol=1e-4, rtol=1e-4), "f32 path mismatch"

    # 1b) bf16 MXU operands (default, fast path): f32 accumulation keeps error small.
    params_bf16 = prepare_adapter_params(w1, b1, w2, b2)  # bf16 default
    out_bf16 = jax.block_until_ready(adapter_forward(x, params_bf16))
    assert out_bf16.shape == (batch, out_dim)
    assert jnp.allclose(out_bf16, ref, atol=5e-2, rtol=5e-2), "bf16 path mismatch"

    # Case 2: ragged / non-128-aligned shapes exercised through the padding path.
    batch2, feature_dim2, out_dim2 = 10, 96, 80
    x2 = jax.random.normal(kx2, (batch2, feature_dim2), jnp.float32)
    w1b, b1b, w2b, b2b = init_adapter_params(kp2, feature_dim2, out_dim2)
    ref2 = _reference(x2, w1b, b1b, w2b, b2b)

    params2_f32 = prepare_adapter_params(w1b, b1b, w2b, b2b, compute_dtype=jnp.float32)
    out2_f32 = jax.block_until_ready(adapter_forward(x2, params2_f32))
    assert out2_f32.shape == (batch2, out_dim2)
    assert jnp.allclose(out2_f32, ref2, atol=1e-4, rtol=1e-4), "f32 padded mismatch"

    params2_bf16 = prepare_adapter_params(w1b, b1b, w2b, b2b)
    out2_bf16 = jax.block_until_ready(adapter_forward(x2, params2_bf16))
    assert out2_bf16.shape == (batch2, out_dim2)
    assert jnp.allclose(out2_bf16, ref2, atol=5e-2, rtol=5e-2), "bf16 padded mismatch"

    print("KERNEL_OK")
</pallas_src>

<mosaic_0001>
module attributes {stable_mosaic.version = 11 : i64} {
  func.func @_adapter_kernel(%arg0: i32, %arg1: memref<64x128xf32, #tpu.memory_space<vmem>>, %arg2: memref<128x128xf32, #tpu.memory_space<vmem>>, %arg3: memref<1x128xf32, #tpu.memory_space<vmem>>, %arg4: memref<128x128xf32, #tpu.memory_space<vmem>>, %arg5: memref<1x128xf32, #tpu.memory_space<vmem>>, %arg6: memref<64x128xf32, #tpu.memory_space<vmem>>, %arg7: memref<64x128xf32, #tpu.memory_space<vmem>>) attributes {dimension_semantics = [#tpu.dimension_semantics<parallel>], iteration_bounds = array<i64: 1>, scalar_prefetch = 0 : i64, scratch_operands = 1 : i64, tpu.core_type = #tpu.core_type<tc>, window_params = [{transform_indices = @transform_0, window_bounds = array<i64: 64, 128>}, {pipeline_mode = #tpu.pipeline_mode<synchronous>, transform_indices = @transform_1, window_bounds = array<i64: 128, 128>}, {pipeline_mode = #tpu.pipeline_mode<synchronous>, transform_indices = @transform_2, window_bounds = array<i64: 1, 128>}, {pipeline_mode = #tpu.pipeline_mode<synchronous>, transform_indices = @transform_3, window_bounds = array<i64: 128, 128>}, {pipeline_mode = #tpu.pipeline_mode<synchronous>, transform_indices = @transform_4, window_bounds = array<i64: 1, 128>}, {transform_indices = @transform_5, window_bounds = array<i64: 64, 128>}]} {
    %c0 = arith.constant 0 : index
    %c0_0 = arith.constant 0 : index
    %0 = vector.load %arg1[%c0, %c0_0] : memref<64x128xf32, #tpu.memory_space<vmem>>, vector<64x128xf32>
    %c0_1 = arith.constant 0 : index
    %c0_2 = arith.constant 0 : index
    %1 = vector.load %arg2[%c0_1, %c0_2] : memref<128x128xf32, #tpu.memory_space<vmem>>, vector<128x128xf32>
    %c0_3 = arith.constant 0 : index
    %c0_4 = arith.constant 0 : index
    %2 = vector.load %arg3[%c0_3, %c0_4] : memref<1x128xf32, #tpu.memory_space<vmem>>, vector<1x128xf32>
    %cst = arith.constant dense<0.000000e+00> : vector<64x128xf32>
    %3 = tpu.matmul %0, %1, %cst {dimension_numbers = #tpu.dot_dimension_numbers<[1], [0], [0], [1], [0, 0, 1, 1], [], []>} : vector<64x128xf32>, vector<128x128xf32>, vector<64x128xf32> -> vector<64x128xf32>
    %4 = vector.broadcast %2 : vector<1x128xf32> to vector<64x128xf32>
    %5 = arith.addf %3, %4 : vector<64x128xf32>
    %cst_5 = arith.constant 5.000000e-01 : f32
    %6 = vector.broadcast %cst_5 : f32 to vector<64x128xf32>
    %7 = arith.mulf %6, %5 : vector<64x128xf32>
    %cst_6 = arith.constant 0.707106769 : f32
    %8 = vector.broadcast %cst_6 : f32 to vector<64x128xf32>
    %9 = arith.mulf %5, %8 : vector<64x128xf32>
    %10 = math.erf %9 : vector<64x128xf32>
    %cst_7 = arith.constant 1.000000e+00 : f32
    %11 = vector.broadcast %cst_7 : f32 to vector<64x128xf32>
    %12 = arith.addf %11, %10 : vector<64x128xf32>
    %13 = arith.mulf %7, %12 : vector<64x128xf32>
    %c0_8 = arith.constant 0 : index
    %c0_9 = arith.constant 0 : index
    %14 = vector.load %arg4[%c0_8, %c0_9] : memref<128x128xf32, #tpu.memory_space<vmem>>, vector<128x128xf32>
    %cst_10 = arith.constant dense<0.000000e+00> : vector<64x128xf32>
    %15 = tpu.matmul %13, %14, %cst_10 {dimension_numbers = #tpu.dot_dimension_numbers<[1], [0], [0], [1], [0, 0, 1, 1], [], []>} : vector<64x128xf32>, vector<128x128xf32>, vector<64x128xf32> -> vector<64x128xf32>
    %c0_11 = arith.constant 0 : index
    %c0_12 = arith.constant 0 : index
    %16 = vector.load %arg7[%c0_11, %c0_12] : memref<64x128xf32, #tpu.memory_space<vmem>>, vector<64x128xf32>
    tpu.vector_store %arg7[%c0_11, %c0_12], %15 {strides = array<i32>} : memref<64x128xf32, #tpu.memory_space<vmem>>, vector<64x128xf32>,
    %c0_13 = arith.constant 0 : index
    %c0_14 = arith.constant 0 : index
    %17 = vector.load %arg7[%c0_13, %c0_14] : memref<64x128xf32, #tpu.memory_space<vmem>>, vector<64x128xf32>
    %c0_15 = arith.constant 0 : index
    %c0_16 = arith.constant 0 : index
    %18 = vector.load %arg5[%c0_15, %c0_16] : memref<1x128xf32, #tpu.memory_space<vmem>>, vector<1x128xf32>
    %19 = vector.broadcast %18 : vector<1x128xf32> to vector<64x128xf32>
    %20 = arith.addf %17, %19 : vector<64x128xf32>
    %c0_17 = arith.constant 0 : index
    %c0_18 = arith.constant 0 : index
    %21 = vector.load %arg6[%c0_17, %c0_18] : memref<64x128xf32, #tpu.memory_space<vmem>>, vector<64x128xf32>
    tpu.vector_store %arg6[%c0_17, %c0_18], %20 {strides = array<i32>} : memref<64x128xf32, #tpu.memory_space<vmem>>, vector<64x128xf32>,
    return
  }
  func.func @transform_0(%arg0: i32) -> (i32, i32) {
    %c0_i32 = arith.constant 0 : i32
    %c0_i32_0 = arith.constant 0 : i32
    return %arg0, %c0_i32 : i32, i32
  }
  func.func @transform_1(%arg0: i32) -> (i32, i32) {
    %c0_i32 = arith.constant 0 : i32
    %c0_i32_0 = arith.constant 0 : i32
    %c0_i32_1 = arith.constant 0 : i32
    return %c0_i32, %c0_i32_0 : i32, i32
  }
  func.func @transform_2(%arg0: i32) -> (i32, i32) {
    %c0_i32 = arith.constant 0 : i32
    %c0_i32_0 = arith.constant 0 : i32
    %c0_i32_1 = arith.constant 0 : i32
    return %c0_i32, %c0_i32_0 : i32, i32
  }
  func.func @transform_3(%arg0: i32) -> (i32, i32) {
    %c0_i32 = arith.constant 0 : i32
    %c0_i32_0 = arith.constant 0 : i32
    %c0_i32_1 = arith.constant 0 : i32
    return %c0_i32, %c0_i32_0 : i32, i32
  }
  func.func @transform_4(%arg0: i32) -> (i32, i32) {
    %c0_i32 = arith.constant 0 : i32
    %c0_i32_0 = arith.constant 0 : i32
    %c0_i32_1 = arith.constant 0 : i32
    return %c0_i32, %c0_i32_0 : i32, i32
  }
  func.func @transform_5(%arg0: i32) -> (i32, i32) {
    %c0_i32 = arith.constant 0 : i32
    %c0_i32_0 = arith.constant 0 : i32
    return %arg0, %c0_i32 : i32, i32
  }
}

</mosaic_0001>

<llo_original>
// kernel: tpu_custom_call.1
$region0: #{tpu_custom_call.1}
  #allocation0 [shape = 'u32[]', space=smem, size = 0x4, offset = 0x4, fixed_abs, tag = 'smem constant byte address 0x4 - core index']
  #allocation1 [shape = 'u32[144,128]{1,0:T(1,128)}', space=vmem, size = 0x12000, scoped, tag = 'internal scratch']
  #allocation2 [shape = 'f32[64,128]{1,0:T(8,128)}', space=vmem, size = 0x8000, scoped, tag = 'scratch operand']
  %s0 = inlined_call_operand.hbm [shape: f32[64,128], index: 0, kind: input, shape index: {}]
  %s1 = inlined_call_operand.hbm [shape: f32[128,128], index: 1, kind: input, shape index: {}]
  %s2 = inlined_call_operand.vmem [shape: f32[1,128], index: 2, kind: input, shape index: {}]
  %s3 = inlined_call_operand.hbm [shape: f32[128,128], index: 3, kind: input, shape index: {}]
  %s4 = inlined_call_operand.vmem [shape: f32[1,128], index: 4, kind: input, shape index: {}]
  %s5 = inlined_call_operand.hbm [shape: f32[64,128], index: 5, kind: output, shape index: {}]
  %s6 = sld [smem:[#allocation0]]
  $region42: #{tpu_custom_call.1} parent=0
    _
  %s8 = ssub.s32 1, %s6
  %s9 = scalar_select 0, %s8, %s6
  $region1: #{tpu_custom_call.1} parent=0
    #allocation3 [shape = 'u8[32768]{0}', space=vmem, size = 0x8000, scoped, tag = 'input window, operand 0, single buffered']
    #allocation4 [shape = 's32[1]{0}', space=sflag, size = 0x4, scoped, tag = 'scoped memory for tpu_custom_call.1']
    #allocation5 [shape = 's32[1]{0}', space=sflag, size = 0x4, scoped, tag = 'scoped memory for tpu_custom_call.1']
    #allocation6 [shape = 'u8[65536]{0}', space=vmem, size = 0x10000, scoped, tag = 'input window, operand 1, single buffered']
    #allocation7 [shape = 's32[1]{0}', space=sflag, size = 0x4, scoped, tag = 'scoped memory for tpu_custom_call.1']
    #allocation8 [shape = 'u8[65536]{0}', space=vmem, size = 0x10000, scoped, tag = 'input window, operand 3, single buffered']
    #allocation9 [shape = 'u8[32768]{0}', space=vmem, size = 0x8000, scoped, tag = 'output window, operand 0, single buffered']
    %10 = vsyncpa [#allocation4], 0
    %11 = vsyncpa [#allocation7], 0
    %12 = vsyncpa [#allocation5], 0
    // Predicated region
    $region2: #{tpu_custom_call.1} parent=1 // pred_check
      _
    $region3: #{tpu_custom_call.1} parent=1 // pred_check_branch
      %14 = sbr.rel (0) target = $region5
    $region4: #{tpu_custom_call.1} parent=1 // pred_region
      %s16 = ssub.s32 1024, 1024
      %17 = vsyncadd [#allocation4], %s16
      %s18 = sshll.u32 [#allocation3], 4
      %s19 = int_to_ptr.vmem [resolvable:$true] %s18
      %24 = dma.hbm_to_vmem [thread:$0]  %s0, 1024, %s19, [#allocation4], 128, 128, 8
    $region5: #{tpu_custom_call.1} parent=1 // pred_fallthru
      _
    // Predicated region
    $region6: #{tpu_custom_call.1} parent=1 // pred_check
      _
    $region7: #{tpu_custom_call.1} parent=1 // pred_check_branch
      %26 = sbr.rel (0) target = $region9
    $region8: #{tpu_custom_call.1} parent=1 // pred_region
      %s28 = ssub.s32 2048, 2048
      %29 = vsyncadd [#allocation7], %s28
      %s30 = sshll.u32 [#allocation6], 4
      %s31 = int_to_ptr.vmem [resolvable:$true] %s30
      %36 = dma.hbm_to_vmem [thread:$0]  %s1, 2048, %s31, [#allocation7], 128, 128, 8
    $region9: #{tpu_custom_call.1} parent=1 // pred_fallthru
      _
    // Predicated region
    $region10: #{tpu_custom_call.1} parent=1 // pred_check
      _
    $region11: #{tpu_custom_call.1} parent=1 // pred_check_branch
      %38 = sbr.rel (0) target = $region13
    $region12: #{tpu_custom_call.1} parent=1 // pred_region
      _
    $region13: #{tpu_custom_call.1} parent=1 // pred_fallthru
      _
    // Predicated region
    $region14: #{tpu_custom_call.1} parent=1 // pred_check
      _
    $region15: #{tpu_custom_call.1} parent=1 // pred_check_branch
      %40 = sbr.rel (0) target = $region17
    $region16: #{tpu_custom_call.1} parent=1 // pred_region
      %s42 = ssub.s32 2048, 2048
      %43 = vsyncadd [#allocation7], %s42
      %s44 = sshll.u32 [#allocation8], 4
      %s45 = int_to_ptr.vmem [resolvable:$true] %s44
      %50 = dma.hbm_to_vmem [thread:$0]  %s3, 2048, %s45, [#allocation7], 128, 128, 8
    $region17: #{tpu_custom_call.1} parent=1 // pred_fallthru
      _
    // Predicated region
    $region18: #{tpu_custom_call.1} parent=1 // pred_check
      _
    $region19: #{tpu_custom_call.1} parent=1 // pred_check_branch
      %52 = sbr.rel (0) target = $region21
    $region20: #{tpu_custom_call.1} parent=1 // pred_region
      _
    $region21: #{tpu_custom_call.1} parent=1 // pred_fallthru
      _
    // Predicated region
    $region22: #{tpu_custom_call.1} parent=1 // pred_check
      _
    $region23: #{tpu_custom_call.1} parent=1 // pred_check_branch
      %54 = sbr.rel (0) target = $region25
    $region24: #{tpu_custom_call.1} parent=1 // pred_region
      %55 = dma.done [#allocation4], 1024
    $region25: #{tpu_custom_call.1} parent=1 // pred_fallthru
      _
    // Predicated region
    $region26: #{tpu_custom_call.1} parent=1 // pred_check
      _
    $region27: #{tpu_custom_call.1} parent=1 // pred_check_branch
      %57 = sbr.rel (0) target = $region29
    $region28: #{tpu_custom_call.1} parent=1 // pred_region
      %58 = dma.done [#allocation7], 2048
    $region29: #{tpu_custom_call.1} parent=1 // pred_fallthru
      _
    // Predicated region
    $region30: #{tpu_custom_call.1} parent=1 // pred_check
      _
    $region31: #{tpu_custom_call.1} parent=1 // pred_check_branch
      %60 = sbr.rel (0) target = $region33
    $region32: #{tpu_custom_call.1} parent=1 // pred_region
      %61 = dma.done [#allocation7], 2048
    $region33: #{tpu_custom_call.1} parent=1 // pred_fallthru
      _
    %v62 = vld [vmem:[#allocation3] sm:$0xff]
    %v63 = vld [vmem:[#allocation3 + $0x8] sm:$0xff]
    %v64 = vld [vmem:[#allocation3 + $0x10] sm:$0xff]
    %v65 = vld [vmem:[#allocation3 + $0x18] sm:$0xff]
    %v66 = vld [vmem:[#allocation3 + $0x20] sm:$0xff]
    %v67 = vld [vmem:[#allocation3 + $0x28] sm:$0xff]
    %v68 = vld [vmem:[#allocation3 + $0x30] sm:$0xff]
    %v69 = vld [vmem:[#allocation3 + $0x38] sm:$0xff]
    %v70 = vld [vmem:[#allocation6] sm:$0xff]
    %v71 = vld [vmem:[#allocation6 + $0x8] sm:$0xff]
    %v72 = vld [vmem:[#allocation6 + $0x10] sm:$0xff]
    %v73 = vld [vmem:[#allocation6 + $0x18] sm:$0xff]
    %v74 = vld [vmem:[#allocation6 + $0x20] sm:$0xff]
    %v75 = vld [vmem:[#allocation6 + $0x28] sm:$0xff]
    %v76 = vld [vmem:[#allocation6 + $0x30] sm:$0xff]
    %v77 = vld [vmem:[#allocation6 + $0x38] sm:$0xff]
    %v78 = vld [vmem:[#allocation6 + $0x40] sm:$0xff]
    %v79 = vld [vmem:[#allocation6 + $0x48] sm:$0xff]
    %v80 = vld [vmem:[#allocation6 + $0x50] sm:$0xff]
    %v81 = vld [vmem:[#allocation6 + $0x58] sm:$0xff]
    %v82 = vld [vmem:[#allocation6 + $0x60] sm:$0xff]
    %v83 = vld [vmem:[#allocation6 + $0x68] sm:$0xff]
    %v84 = vld [vmem:[#allocation6 + $0x70] sm:$0xff]
    %v85 = vld [vmem:[#allocation6 + $0x78] sm:$0xff]
    %v86 = vld [vmem:[%s2] sm:$0x1]
    %v88 = vlaneseq
    %v89 = vshrl.u32 %v88, 7
    %v90 = vsub.s32 0, %v89
    %v91 = vrot.slane %v86, %v90
    %93 = vmatprep.subr.mxu0 0.0
    %94 = vmatpush1.msra.mxu0 %v85
    %95 = vmatprep.subr.mxu0 0.0
    %96 = vmatpush1.msra.mxu0 %v84
    %97 = vmatprep.subr.mxu0 0.0
    %98 = vmatpush1.msra.mxu0 %v83
    %99 = vmatprep.subr.mxu0 0.0
    %100 = vmatpush1.msra.mxu0 %v82
    %101 = vmatprep.subr.mxu0 0.0
    %102 = vmatpush1.msra.mxu0 %v81
    %103 = vmatprep.subr.mxu0 0.0
    %104 = vmatpush1.msra.mxu0 %v80
    %105 = vmatprep.subr.mxu0 0.0
    %106 = vmatpush1.msra.mxu0 %v79
    %107 = vmatprep.subr.mxu0 0.0
    %108 = vmatpush1.msra.mxu0 %v78
    %109 = vmatprep.subr.mxu0 0.0
    %110 = vmatpush1.msra.mxu0 %v77
    %111 = vmatprep.subr.mxu0 0.0
    %112 = vmatpush1.msra.mxu0 %v76
    %113 = vmatprep.subr.mxu0 0.0
    %114 = vmatpush1.msra.mxu0 %v75
    %115 = vmatprep.subr.mxu0 0.0
    %116 = vmatpush1.msra.mxu0 %v74
    %117 = vmatprep.subr.mxu0 0.0
    %118 = vmatpush1.msra.mxu0 %v73
    %119 = vmatprep.subr.mxu0 0.0
    %120 = vmatpush1.msra.mxu0 %v72
    %121 = vmatprep.subr.mxu0 0.0
    %122 = vmatpush1.msra.mxu0 %v71
    %123 = vmatprep.subr.mxu0 0.0
    %124 = vmatpush1.msra.mxu0 %v70
    %125 = vmatprep.subr.mxu0 0.0
    %126 = vmatpush2.msra.mxu0 0.0
    %127 = vmatprep.subr.mxu0 0.0
    %128 = vmatpush2.msra.mxu0 0.0
    %129 = vmatprep.subr.mxu0 0.0
    %130 = vmatpush2.msra.mxu0 0.0
    %131 = vmatprep.subr.mxu0 0.0
    %132 = vmatpush2.msra.mxu0 0.0
    %133 = vmatprep.subr.mxu0 0.0
    %134 = vmatpush2.msra.mxu0 0.0
    %135 = vmatprep.subr.mxu0 0.0
    %136 = vmatpush2.msra.mxu0 0.0
    %137 = vmatprep.subr.mxu0 0.0
    %138 = vmatpush2.msra.mxu0 0.0
    %139 = vmatprep.subr.mxu0 0.0
    %140 = vmatpush2.msra.mxu0 0.0
    %141 = vmatprep.subr.mxu0 0.0
    %142 = vmatpush2.msra.mxu0 0.0
    %143 = vmatprep.subr.mxu0 0.0
    %144 = vmatpush2.msra.mxu0 0.0
    %145 = vmatprep.subr.mxu0 0.0
    %146 = vmatpush2.msra.mxu0 0.0
    %147 = vmatprep.subr.mxu0 0.0
    %148 = vmatpush2.msra.mxu0 0.0
    %149 = vmatprep.subr.mxu0 0.0
    %150 = vmatpush2.msra.mxu0 0.0
    %151 = vmatprep.subr.mxu0 0.0
    %152 = vmatpush2.msra.mxu0 0.0
    %153 = vmatprep.subr.mxu0 0.0
    %154 = vmatpush2.msra.mxu0 0.0
    %155 = vmatprep.subr.mxu0 0.0
    %156 = vmatpush2.msra.mxu0 0.0
    %157 = vmatprep.mubr.f32.mxu0 0.0
    %158 = vmatmul.mubr.f32.gmra.mxu0 %v62
    %v159 = vpop.f32.mrf.mxu0
    %v160 = vadd.f32 %v91, %v159
    %v161 = vpop.f32.mrf.mxu0
    %162 = vmatprep.mubr.f32.mxu0 0.0
    %163 = vmatmul.mubr.f32.gmra.mxu0 %v63
    %v164 = vpop.f32.mrf.mxu0
    %v165 = vadd.f32 %v91, %v164
    %v166 = vpop.f32.mrf.mxu0
    %167 = vmatprep.mubr.f32.mxu0 0.0
    %168 = vmatmul.mubr.f32.gmra.mxu0 %v64
    %v169 = vpop.f32.mrf.mxu0
    %v170 = vadd.f32 %v91, %v169
    %v171 = vpop.f32.mrf.mxu0
    %172 = vmatprep.mubr.f32.mxu0 0.0
    %173 = vmatmul.mubr.f32.gmra.mxu0 %v65
    %v174 = vpop.f32.mrf.mxu0
    %v175 = vadd.f32 %v91, %v174
    %v176 = vpop.f32.mrf.mxu0
    %177 = vmatprep.mubr.f32.mxu0 0.0
    %178 = vmatmul.mubr.f32.gmra.mxu0 %v66
    %v179 = vpop.f32.mrf.mxu0
    %v180 = vadd.f32 %v91, %v179
    %v181 = vpop.f32.mrf.mxu0
    %182 = vmatprep.mubr.f32.mxu0 0.0
    %183 = vmatmul.mubr.f32.gmra.mxu0 %v67
    %v184 = vpop.f32.mrf.mxu0
    %v185 = vadd.f32 %v91, %v184
    %v186 = vpop.f32.mrf.mxu0
    %187 = vmatprep.mubr.f32.mxu0 0.0
    %188 = vmatmul.mubr.f32.gmra.mxu0 %v68
    %v189 = vpop.f32.mrf.mxu0
    %v190 = vadd.f32 %v91, %v189
    %v191 = vpop.f32.mrf.mxu0
    %192 = vmatprep.mubr.f32.mxu0 0.0
    %193 = vmatmul.mubr.f32.gmra.mxu0 %v69
    %v194 = vpop.f32.mrf.mxu0
    %v195 = vadd.f32 %v91, %v194
    %v196 = vpop.f32.mrf.mxu0
    %197 = vdwg.mxu0
    %v198 = vmul.f32 %v160, 0.5
    %v199 = vmul.f32 %v165, 0.5
    %v200 = vmul.f32 %v170, 0.5
    %v201 = vmul.f32 %v175, 0.5
    %v202 = vmul.f32 %v180, 0.5
    %v203 = vmul.f32 %v185, 0.5
    %v204 = vmul.f32 %v190, 0.5
    %v205 = vmul.f32 %v195, 0.5
    %v206 = vmul.f32 %v160, 0.70710677
    %v207 = vmul.f32 %v165, 0.70710677
    %v208 = vmul.f32 %v170, 0.70710677
    %v209 = vmul.f32 %v175, 0.70710677
    %v210 = vmul.f32 %v180, 0.70710677
    %v211 = vmul.f32 %v185, 0.70710677
    %v212 = vmul.f32 %v190, 0.70710677
    %v213 = vmul.f32 %v195, 0.70710677
    %v214 = verf.f32.pop %v206
    %v215 = verf.f32.pop %v207
    %v216 = verf.f32.pop %v208
    %v217 = verf.f32.pop %v209
    %v218 = verf.f32.pop %v210
    %v219 = verf.f32.pop %v211
    %v220 = verf.f32.pop %v212
    %v221 = verf.f32.pop %v213
    %v222 = vadd.f32 %v214, 1.0
    %v223 = vadd.f32 %v215, 1.0
    %v224 = vadd.f32 %v216, 1.0
    %v225 = vadd.f32 %v217, 1.0
    %v226 = vadd.f32 %v218, 1.0
    %v227 = vadd.f32 %v219, 1.0
    %v228 = vadd.f32 %v220, 1.0
    %v229 = vadd.f32 %v221, 1.0
    %v230 = vmul.f32 %v198, %v222
    %v231 = vmul.f32 %v199, %v223
    %v232 = vmul.f32 %v200, %v224
    %v233 = vmul.f32 %v201, %v225
    %v234 = vmul.f32 %v202, %v226
    %v235 = vmul.f32 %v203, %v227
    %v236 = vmul.f32 %v204, %v228
    %v237 = vmul.f32 %v205, %v229
    %v238 = vld [vmem:[#allocation8] sm:$0xff]
    %v239 = vld [vmem:[#allocation8 + $0x8] sm:$0xff]
    %v240 = vld [vmem:[#allocation8 + $0x10] sm:$0xff]
    %v241 = vld [vmem:[#allocation8 + $0x18] sm:$0xff]
    %v242 = vld [vmem:[#allocation8 + $0x20] sm:$0xff]
    %v243 = vld [vmem:[#allocation8 + $0x28] sm:$0xff]
    %v244 = vld [vmem:[#allocation8 + $0x30] sm:$0xff]
    %v245 = vld [vmem:[#allocation8 + $0x38] sm:$0xff]
    %v246 = vld [vmem:[#allocation8 + $0x40] sm:$0xff]
    %v247 = vld [vmem:[#allocation8 + $0x48] sm:$0xff]
    %v248 = vld [vmem:[#allocation8 + $0x50] sm:$0xff]
    %v249 = vld [vmem:[#allocation8 + $0x58] sm:$0xff]
    %v250 = vld [vmem:[#allocation8 + $0x60] sm:$0xff]
    %v251 = vld [vmem:[#allocation8 + $0x68] sm:$0xff]
    %v252 = vld [vmem:[#allocation8 + $0x70] sm:$0xff]
    %v253 = vld [vmem:[#allocation8 + $0x78] sm:$0xff]
    %254 = vmatprep.subr.mxu0 0.0
    %255 = vmatpush1.msra.mxu0 %v253
    %256 = vmatprep.subr.mxu0 0.0
    %257 = vmatpush1.msra.mxu0 %v252
    %258 = vmatprep.subr.mxu0 0.0
    %259 = vmatpush1.msra.mxu0 %v251
    %260 = vmatprep.subr.mxu0 0.0
    %261 = vmatpush1.msra.mxu0 %v250
    %262 = vmatprep.subr.mxu0 0.0
    %263 = vmatpush1.msra.mxu0 %v249
    %264 = vmatprep.subr.mxu0 0.0
    %265 = vmatpush1.msra.mxu0 %v248
    %266 = vmatprep.subr.mxu0 0.0
    %267 = vmatpush1.msra.mxu0 %v247
    %268 = vmatprep.subr.mxu0 0.0
    %269 = vmatpush1.msra.mxu0 %v246
    %270 = vmatprep.subr.mxu0 0.0
    %271 = vmatpush1.msra.mxu0 %v245
    %272 = vmatprep.subr.mxu0 0.0
    %273 = vmatpush1.msra.mxu0 %v244
    %274 = vmatprep.subr.mxu0 0.0
    %275 = vmatpush1.msra.mxu0 %v243
    %276 = vmatprep.subr.mxu0 0.0
    %277 = vmatpush1.msra.mxu0 %v242
    %278 = vmatprep.subr.mxu0 0.0
    %279 = vmatpush1.msra.mxu0 %v241
    %280 = vmatprep.subr.mxu0 0.0
    %281 = vmatpush1.msra.mxu0 %v240
    %282 = vmatprep.subr.mxu0 0.0
    %283 = vmatpush1.msra.mxu0 %v239
    %284 = vmatprep.subr.mxu0 0.0
    %285 = vmatpush1.msra.mxu0 %v238
    %286 = vmatprep.subr.mxu0 0.0
    %287 = vmatpush2.msra.mxu0 0.0
    %288 = vmatprep.subr.mxu0 0.0
    %289 = vmatpush2.msra.mxu0 0.0
    %290 = vmatprep.subr.mxu0 0.0
    %291 = vmatpush2.msra.mxu0 0.0
    %292 = vmatprep.subr.mxu0 0.0
    %293 = vmatpush2.msra.mxu0 0.0
    %294 = vmatprep.subr.mxu0 0.0
    %295 = vmatpush2.msra.mxu0 0.0
    %296 = vmatprep.subr.mxu0 0.0
    %297 = vmatpush2.msra.mxu0 0.0
    %298 = vmatprep.subr.mxu0 0.0
    %299 = vmatpush2.msra.mxu0 0.0
    %300 = vmatprep.subr.mxu0 0.0
    %301 = vmatpush2.msra.mxu0 0.0
    %302 = vmatprep.subr.mxu0 0.0
    %303 = vmatpush2.msra.mxu0 0.0
    %304 = vmatprep.subr.mxu0 0.0
    %305 = vmatpush2.msra.mxu0 0.0
    %306 = vmatprep.subr.mxu0 0.0
    %307 = vmatpush2.msra.mxu0 0.0
    %308 = vmatprep.subr.mxu0 0.0
    %309 = vmatpush2.msra.mxu0 0.0
    %310 = vmatprep.subr.mxu0 0.0
    %311 = vmatpush2.msra.mxu0 0.0
    %312 = vmatprep.subr.mxu0 0.0
    %313 = vmatpush2.msra.mxu0 0.0
    %314 = vmatprep.subr.mxu0 0.0
    %315 = vmatpush2.msra.mxu0 0.0
    %316 = vmatprep.subr.mxu0 0.0
    %317 = vmatpush2.msra.mxu0 0.0
    %318 = vmatprep.mubr.f32.mxu0 0.0
    %319 = vmatmul.mubr.f32.gmra.mxu0 %v230
    %v320 = vpop.f32.mrf.mxu0
    %v321 = vadd.f32 0.0, %v320
    %v322 = vpop.f32.mrf.mxu0
    %323 = vmatprep.mubr.f32.mxu0 0.0
    %324 = vmatmul.mubr.f32.gmra.mxu0 %v231
    %v325 = vpop.f32.mrf.mxu0
    %v326 = vadd.f32 0.0, %v325
    %v327 = vpop.f32.mrf.mxu0
    %328 = vmatprep.mubr.f32.mxu0 0.0
    %329 = vmatmul.mubr.f32.gmra.mxu0 %v232
    %v330 = vpop.f32.mrf.mxu0
    %v331 = vadd.f32 0.0, %v330
    %v332 = vpop.f32.mrf.mxu0
    %333 = vmatprep.mubr.f32.mxu0 0.0
    %334 = vmatmul.mubr.f32.gmra.mxu0 %v233
    %v335 = vpop.f32.mrf.mxu0
    %v336 = vadd.f32 0.0, %v335
    %v337 = vpop.f32.mrf.mxu0
    %338 = vmatprep.mubr.f32.mxu0 0.0
    %339 = vmatmul.mubr.f32.gmra.mxu0 %v234
    %v340 = vpop.f32.mrf.mxu0
    %v341 = vadd.f32 0.0, %v340
    %v342 = vpop.f32.mrf.mxu0
    %343 = vmatprep.mubr.f32.mxu0 0.0
    %344 = vmatmul.mubr.f32.gmra.mxu0 %v235
    %v345 = vpop.f32.mrf.mxu0
    %v346 = vadd.f32 0.0, %v345
    %v347 = vpop.f32.mrf.mxu0
    %348 = vmatprep.mubr.f32.mxu0 0.0
    %349 = vmatmul.mubr.f32.gmra.mxu0 %v236
    %v350 = vpop.f32.mrf.mxu0
    %v351 = vadd.f32 0.0, %v350
    %v352 = vpop.f32.mrf.mxu0
    %353 = vmatprep.mubr.f32.mxu0 0.0
    %354 = vmatmul.mubr.f32.gmra.mxu0 %v237
    %v355 = vpop.f32.mrf.mxu0
    %v356 = vadd.f32 0.0, %v355
    %v357 = vpop.f32.mrf.mxu0
    %358 = vdwg.mxu0
    %359 = vst [vmem:[#allocation2] sm:$0xff] %v321
    %360 = vst [vmem:[#allocation2 + $0x8] sm:$0xff] %v326
    %361 = vst [vmem:[#allocation2 + $0x10] sm:$0xff] %v331
    %362 = vst [vmem:[#allocation2 + $0x18] sm:$0xff] %v336
    %363 = vst [vmem:[#allocation2 + $0x20] sm:$0xff] %v341
    %364 = vst [vmem:[#allocation2 + $0x28] sm:$0xff] %v346
    %365 = vst [vmem:[#allocation2 + $0x30] sm:$0xff] %v351
    %366 = vst [vmem:[#allocation2 + $0x38] sm:$0xff] %v356
    %v367 = vld [vmem:[#allocation2] sm:$0xff]
    %v368 = vld [vmem:[#allocation2 + $0x8] sm:$0xff]
    %v369 = vld [vmem:[#allocation2 + $0x10] sm:$0xff]
    %v370 = vld [vmem:[#allocation2 + $0x18] sm:$0xff]
    %v371 = vld [vmem:[#allocation2 + $0x20] sm:$0xff]
    %v372 = vld [vmem:[#allocation2 + $0x28] sm:$0xff]
    %v373 = vld [vmem:[#allocation2 + $0x30] sm:$0xff]
    %v374 = vld [vmem:[#allocation2 + $0x38] sm:$0xff]
    %v375 = vld [vmem:[%s4] sm:$0x1]
    %v377 = vlaneseq
    %v378 = vshrl.u32 %v377, 7
    %v379 = vsub.s32 0, %v378
    %v380 = vrot.slane %v375, %v379
    %v382 = vadd.f32 %v367, %v380
    %v383 = vadd.f32 %v368, %v380
    %v384 = vadd.f32 %v369, %v380
    %v385 = vadd.f32 %v370, %v380
    %v386 = vadd.f32 %v371, %v380
    %v387 = vadd.f32 %v372, %v380
    %v388 = vadd.f32 %v373, %v380
    %v389 = vadd.f32 %v374, %v380
    %390 = vst [vmem:[#allocation9] sm:$0xff] %v382
    %391 = vst [vmem:[#allocation9 + $0x8] sm:$0xff] %v383
    %392 = vst [vmem:[#allocation9 + $0x10] sm:$0xff] %v384
    %393 = vst [vmem:[#allocation9 + $0x18] sm:$0xff] %v385
    %394 = vst [vmem:[#allocation9 + $0x20] sm:$0xff] %v386
    %395 = vst [vmem:[#allocation9 + $0x28] sm:$0xff] %v387
    %396 = vst [vmem:[#allocation9 + $0x30] sm:$0xff] %v388
    %397 = vst [vmem:[#allocation9 + $0x38] sm:$0xff] %v389
    // Predicated region
    $region34: #{tpu_custom_call.1} parent=1 // pred_check
      _
    $region35: #{tpu_custom_call.1} parent=1 // pred_check_branch
      %399 = sbr.rel (0) target = $region37
    $region36: #{tpu_custom_call.1} parent=1 // pred_region
      %s401 = ssub.s32 1024, 1024
      %402 = vsyncadd [#allocation5], %s401
      %s403 = sshll.u32 [#allocation9], 4
      %s404 = int_to_ptr.vmem [resolvable:$true] %s403
      %409 = dma.vmem_to_hbm [thread:$0]  %s404, 1024, %s5, [#allocation5], 128, 128, 8
    $region37: #{tpu_custom_call.1} parent=1 // pred_fallthru
      _
    // Predicated region
    $region38: #{tpu_custom_call.1} parent=1 // pred_check
      _
    $region39: #{tpu_custom_call.1} parent=1 // pred_check_branch
      %411 = sbr.rel (0) target = $region41
    $region40: #{tpu_custom_call.1} parent=1 // pred_region
      %412 = dma.done [#allocation5], 1024
    $region41: #{tpu_custom_call.1} parent=1 // pred_fallthru
      _
    %413 = vsyncpa [#allocation4], 1
    %414 = vsyncpa [#allocation7], 1
    %415 = vsyncpa [#allocation5], 1

</llo_original>
